<compile_context>
chip_gen: v6e
topology: v6e:2x2x1
jax: 0.10.0
libtpu: 0.0.40
codegen_flags: <defaults>
</compile_context>

<pallas_src>
import functools
import math

import jax
import jax.numpy as jnp
from jax.experimental import pallas as pl
from jax.experimental.pallas import tpu as pltpu


# ----------------------------- kernels --------------------------------------

def _pe_add_kernel(x_ref, pe_ref, o_ref, *, batch):
    # x_ref: (ts, B*D), pe_ref: (ts, D) -> tile pe across the batch lanes.
    pe_b = jnp.tile(pe_ref[...], (1, batch)).astype(x_ref.dtype)
    o_ref[...] = x_ref[...] + pe_b


def _pe_add_dropout_kernel(x_ref, pe_ref, bits_ref, o_ref, *, batch, threshold, inv_keep):
    # bits_ref: (ts, B*D) uint32 random bits; keep iff bits >= threshold
    # (P(keep) = 1 - p), scale kept values by 1/(1-p). Math in f32, single cast at store.
    pe_b = jnp.tile(pe_ref[...], (1, batch)).astype(jnp.float32)
    y = x_ref[...].astype(jnp.float32) + pe_b
    keep = bits_ref[...] >= jnp.uint32(threshold)
    o_ref[...] = jnp.where(keep, y * jnp.float32(inv_keep), 0.0).astype(o_ref.dtype)


# ----------------------------- parameters -----------------------------------

def make_positional_encoding_table(d_model, max_len=5000, dtype=jnp.float32):
    """Deterministic pe buffer, identical math to the PyTorch __init__.

    Returns shape (max_len, 1, d_model)."""
    position = jnp.arange(max_len, dtype=jnp.float32)[:, None]                 # (max_len, 1)
    div_term = jnp.exp(
        jnp.arange(0, d_model, 2, dtype=jnp.float32) * (-math.log(10000.0) / d_model)
    )                                                                          # (d_model//2,)
    pe = jnp.zeros((max_len, d_model), dtype=jnp.float32)
    pe = pe.at[:, 0::2].set(jnp.sin(position * div_term))
    pe = pe.at[:, 1::2].set(jnp.cos(position * div_term))
    return pe[:, None, :].astype(dtype)                                        # (max_len, 1, d_model)


# ----------------------------- wrapper ---------------------------------------

def _choose_seq_tile(S, row_bytes, target_bytes):
    """Largest ts that is a multiple of 8, divides S and keeps the x tile under
    target_bytes; fall back to ts = S when no such divisor exists."""
    budget_rows = max(1, target_bytes // max(1, row_bytes))
    best = None
    for ts in range(8, S + 1, 8):
        if S % ts == 0 and ts <= budget_rows:
            best = ts
    return S if best is None else best


def positional_encoding(x, pe, *, dropout_p=0.1, training=False, rng=None,
                        seq_tile=None, block_bytes=4 << 20):
    """x: (S, B, D);  pe: (max_len, 1, D) or (max_len, D).  Returns (S, B, D)."""
    S, B, D = x.shape
    BD = B * D
    pe2 = pe.reshape(pe.shape[0], D) if pe.ndim == 3 else pe
    max_len = pe2.shape[0]
    assert S <= max_len, "sequence longer than positional-encoding table"

    # Lane-dense 2-D view of x / out (contiguous reshape — free in the wrapper).
    x2 = x.reshape(S, BD)

    row_bytes = BD * x.dtype.itemsize
    ts = seq_tile if seq_tile is not None else _choose_seq_tile(S, row_bytes, block_bytes)
    assert S % ts == 0, "seq_tile must divide the sequence length"
    if ts % 8 != 0:
        # Block first dim must be a multiple of 8 or equal the full array dim;
        # when ts == S is not 8-aligned, shrink pe so its full dim equals ts too.
        pe2 = pe2[:S]
    grid = (S // ts,)

    # VMEM budget: double-buffered x + out (+ bits) tiles plus the small pe tile.
    x_tile_b = ts * BD * x.dtype.itemsize
    pe_tile_b = ts * D * pe2.dtype.itemsize
    bits_tile_b = ts * BD * 4 if (training and dropout_p > 0.0) else 0
    vmem_needed = 2 * (2 * x_tile_b + pe_tile_b + bits_tile_b) + (2 << 20)
    vmem_limit = int(min(48 << 20, max(32 << 20, vmem_needed)))

    compiler_params = pltpu.CompilerParams(
        dimension_semantics=("parallel",),      # megacore sharding on v7x
        vmem_limit_bytes=vmem_limit,
    )
    out_shape = jax.ShapeDtypeStruct((S, BD), x.dtype)
    x_spec = pl.BlockSpec((ts, BD), lambda i: (i, 0))
    pe_spec = pl.BlockSpec((ts, D), lambda i: (i, 0))
    out_spec = pl.BlockSpec((ts, BD), lambda i: (i, 0))

    if training and dropout_p > 0.0:
        if rng is None:
            rng = jax.random.PRNGKey(0)
        bits = jax.random.bits(rng, (S, BD), dtype=jnp.uint32)
        threshold = min(int(round(float(dropout_p) * float(2**32))), 2**32 - 1)
        kernel = functools.partial(
            _pe_add_dropout_kernel, batch=B, threshold=threshold,
            inv_keep=1.0 / (1.0 - float(dropout_p)))
        grid_spec = pltpu.PrefetchScalarGridSpec(
            num_scalar_prefetch=0, grid=grid,
            in_specs=[x_spec, pe_spec, x_spec],
            out_specs=out_spec)
        y2 = pl.pallas_call(kernel, grid_spec=grid_spec, out_shape=out_shape,
                            compiler_params=compiler_params)(x2, pe2, bits)
    else:
        kernel = functools.partial(_pe_add_kernel, batch=B)
        grid_spec = pltpu.PrefetchScalarGridSpec(
            num_scalar_prefetch=0, grid=grid,
            in_specs=[x_spec, pe_spec],
            out_specs=out_spec)
        y2 = pl.pallas_call(kernel, grid_spec=grid_spec, out_shape=out_shape,
                            compiler_params=compiler_params)(x2, pe2)

    return y2.reshape(S, B, D)


# ----------------------------- test ------------------------------------------

if __name__ == "__main__":
    S, B, D = 8, 2, 32          # seq=8, batch=2, d_model=32
    MAX_LEN = 64
    P = 0.1

    key = jax.random.PRNGKey(0)
    kx, kdrop = jax.random.split(key)
    x = jax.random.normal(kx, (S, B, D), dtype=jnp.float32)

    pe = make_positional_encoding_table(D, max_len=MAX_LEN, dtype=jnp.float32)
    y_ref = x + pe[:S]                               # plain-JAX reference

    # Eval mode (dropout = identity) — deterministic, matches nn.Dropout.eval().
    y = positional_encoding(x, pe, dropout_p=P, training=False)
    y = jax.block_until_ready(y)
    assert y.shape == (S, B, D)
    assert jnp.allclose(y, y_ref, atol=1e-6, rtol=1e-6), "eval-mode mismatch vs reference"

    # Train mode: every element is either dropped (0) or scaled by 1/(1-p).
    y_train = positional_encoding(x, pe, dropout_p=P, training=True, rng=kdrop)
    y_train = jax.block_until_ready(y_train)
    assert y_train.shape == (S, B, D)
    ok = jnp.isclose(y_train, 0.0) | jnp.isclose(y_train, y_ref / (1.0 - P),
                                                 atol=1e-5, rtol=1e-5)
    assert bool(jnp.all(ok)), "train-mode dropout values inconsistent with mask/scale semantics"

    print("KERNEL_OK")
</pallas_src>

<mosaic_0001>
module attributes {stable_mosaic.version = 11 : i64} {
  func.func @_pe_add_kernel(%arg0: i32, %arg1: memref<8x64xf32, #tpu.memory_space<vmem>>, %arg2: memref<8x32xf32, #tpu.memory_space<vmem>>, %arg3: memref<8x64xf32, #tpu.memory_space<vmem>>) attributes {dimension_semantics = [#tpu.dimension_semantics<parallel>], iteration_bounds = array<i64: 1>, scalar_prefetch = 0 : i64, scratch_operands = 0 : i64, tpu.core_type = #tpu.core_type<tc>, window_params = [{transform_indices = @transform_0, window_bounds = array<i64: 8, 64>}, {transform_indices = @transform_1, window_bounds = array<i64: 8, 32>}, {transform_indices = @transform_2, window_bounds = array<i64: 8, 64>}]} {
    %c0 = arith.constant 0 : index
    %c0_0 = arith.constant 0 : index
    %0 = vector.load %arg2[%c0, %c0_0] : memref<8x32xf32, #tpu.memory_space<vmem>>, vector<8x32xf32>
    %1 = tpu.concatenate %0, %0 in 1 : vector<8x32xf32>, vector<8x32xf32> -> vector<8x64xf32>
    %c0_1 = arith.constant 0 : index
    %c0_2 = arith.constant 0 : index
    %2 = vector.load %arg1[%c0_1, %c0_2] : memref<8x64xf32, #tpu.memory_space<vmem>>, vector<8x64xf32>
    %3 = arith.addf %2, %1 : vector<8x64xf32>
    %c0_3 = arith.constant 0 : index
    %c0_4 = arith.constant 0 : index
    %4 = vector.load %arg3[%c0_3, %c0_4] : memref<8x64xf32, #tpu.memory_space<vmem>>, vector<8x64xf32>
    tpu.vector_store %arg3[%c0_3, %c0_4], %3 {strides = array<i32>} : memref<8x64xf32, #tpu.memory_space<vmem>>, vector<8x64xf32>,
    return
  }
  func.func @transform_0(%arg0: i32) -> (i32, i32) {
    %c0_i32 = arith.constant 0 : i32
    %c0_i32_0 = arith.constant 0 : i32
    return %arg0, %c0_i32 : i32, i32
  }
  func.func @transform_1(%arg0: i32) -> (i32, i32) {
    %c0_i32 = arith.constant 0 : i32
    %c0_i32_0 = arith.constant 0 : i32
    return %arg0, %c0_i32 : i32, i32
  }
  func.func @transform_2(%arg0: i32) -> (i32, i32) {
    %c0_i32 = arith.constant 0 : i32
    %c0_i32_0 = arith.constant 0 : i32
    return %arg0, %c0_i32 : i32, i32
  }
}

</mosaic_0001>

<llo_original>
// kernel: tpu_custom_call.1
$region0: #{tpu_custom_call.1}
  #allocation0 [shape = 'u32[]', space=smem, size = 0x4, offset = 0x4, fixed_abs, tag = 'smem constant byte address 0x4 - core index']
  #allocation1 [shape = 'u32[144,128]{1,0:T(1,128)}', space=vmem, size = 0x12000, scoped, tag = 'internal scratch']
  %s0 = inlined_call_operand.vmem [shape: f32[8,64], index: 0, kind: input, shape index: {}]
  %s1 = inlined_call_operand.vmem [shape: f32[64,32], index: 1, kind: input, shape index: {}]
  %s2 = inlined_call_operand.hbm [shape: f32[8,64], index: 2, kind: output, shape index: {}]
  %s3 = sld [smem:[#allocation0]]
  $region18: #{tpu_custom_call.1} parent=0
    _
  %s5 = ssub.s32 1, %s3
  %s6 = scalar_select 0, %s5, %s3
  $region1: #{tpu_custom_call.1} parent=0
    #allocation2 [shape = 'u8[4096]{0}', space=vmem, size = 0x1000, scoped, tag = 'output window, operand 0, single buffered']
    #allocation3 [shape = 's32[1]{0}', space=sflag, size = 0x4, scoped, tag = 'scoped memory for tpu_custom_call.1']
    %7 = vsyncpa [#allocation3], 0
    // Predicated region
    $region2: #{tpu_custom_call.1} parent=1 // pred_check
      _
    $region3: #{tpu_custom_call.1} parent=1 // pred_check_branch
      %9 = sbr.rel (0) target = $region5
    $region4: #{tpu_custom_call.1} parent=1 // pred_region
      _
    $region5: #{tpu_custom_call.1} parent=1 // pred_fallthru
      _
    // Predicated region
    $region6: #{tpu_custom_call.1} parent=1 // pred_check
      _
    $region7: #{tpu_custom_call.1} parent=1 // pred_check_branch
      %11 = sbr.rel (0) target = $region9
    $region8: #{tpu_custom_call.1} parent=1 // pred_region
      _
    $region9: #{tpu_custom_call.1} parent=1 // pred_fallthru
      _
    %v12 = vld [vmem:[%s1] sm:$0xff]
    %14 = vrot.lane.b32.xlu0 %v12, 32
    %v15 = vpop.permute.xlu0 %14
    %vm17 = vcmask 261120
    %v18 = vsel %vm17, %v12, %v15
    %v19 = vld [vmem:[%s0] sm:$0xff]
    %v20 = vadd.f32 %v19, %v18
    %vm21 = vcmask 523264
    %22 = vst.msk [vmem:[#allocation2] sm:$0xff] %vm21, %v20
    // Predicated region
    $region10: #{tpu_custom_call.1} parent=1 // pred_check
      _
    $region11: #{tpu_custom_call.1} parent=1 // pred_check_branch
      %24 = sbr.rel (0) target = $region13
    $region12: #{tpu_custom_call.1} parent=1 // pred_region
      %s26 = ssub.s32 128, 128
      %27 = vsyncadd [#allocation3], %s26
      %s29 = sshll.u32 [#allocation2], 4
      %s30 = int_to_ptr.vmem [resolvable:$true] %s29
      %32 = dma.vmem_to_hbm [thread:$0]  %s30, 128, %s2, [#allocation3]
    $region13: #{tpu_custom_call.1} parent=1 // pred_fallthru
      _
    // Predicated region
    $region14: #{tpu_custom_call.1} parent=1 // pred_check
      _
    $region15: #{tpu_custom_call.1} parent=1 // pred_check_branch
      %34 = sbr.rel (0) target = $region17
    $region16: #{tpu_custom_call.1} parent=1 // pred_region
      %35 = dma.done [#allocation3], 128
    $region17: #{tpu_custom_call.1} parent=1 // pred_fallthru
      _
    %36 = vsyncpa [#allocation3], 1

</llo_original>
